<compile_context>
chip_gen: v7x
topology: tpu7x:2x2x1
jax: 0.10.0
libtpu: 0.0.40
codegen_flags: <defaults>
</compile_context>

<pallas_src>
import functools
import math

import jax
import jax.numpy as jnp
from jax import lax
from jax.experimental import pallas as pl
from jax.experimental.pallas import tpu as pltpu

_LANE = 128
_SUB = 8
_MIN_ROWS = _LANE * _SUB  # 1024 rows = minimal (8,128)-aligned row tile

# Offsets of the packed parameter scalars (float32, SMEM).
_W1, _B1, _W2, _B2, _W3, _B3 = 0, 32, 48, 80, 82, 88
_NPARAMS = 91


def _mlp_kernel(p_ref, x_ref, out_ref, *, embedding, chunk, n_chunks):
    """One grid step over `tg = n_chunks * chunk` sublane-rows (x 128 lanes)."""
    f32 = jnp.float32

    # Read all weight/bias scalars once per grid step from SMEM (loop-invariant).
    w1 = [[p_ref[_W1 + 2 * j + k] for k in range(2)] for j in range(16)]
    b1 = [p_ref[_B1 + j] for j in range(16)]
    w2 = [[p_ref[_W2 + 16 * m + j] for j in range(16)] for m in range(2)]
    b2 = [p_ref[_B2 + m] for m in range(2)]
    if not embedding:
        w3 = [[p_ref[_W3 + 2 * k + m] for m in range(2)] for k in range(3)]
        b3 = [p_ref[_B3 + k] for k in range(3)]

    def compute_chunk(r):
        sl = pl.ds(r, chunk)
        x0 = x_ref[0, sl, :].astype(f32)   # (chunk, 128), lane/sublane dense
        x1 = x_ref[1, sl, :].astype(f32)

        # layer1 (2->16) + ReLU fused into the layer2 (16->2) accumulation:
        # only x0, x1, two accumulators and one hidden row are live at a time.
        acc0 = jnp.zeros_like(x0) + b2[0]
        acc1 = jnp.zeros_like(x0) + b2[1]
        for j in range(16):
            h = jnp.maximum(x0 * w1[j][0] + x1 * w1[j][1] + b1[j], 0.0)
            acc0 = acc0 + h * w2[0][j]
            acc1 = acc1 + h * w2[1][j]
        h0 = jnp.maximum(acc0, 0.0)
        h1 = jnp.maximum(acc1, 0.0)

        if embedding:
            out_ref[0, sl, :] = h0.astype(out_ref.dtype)
            out_ref[1, sl, :] = h1.astype(out_ref.dtype)
        else:
            for k in range(3):  # FC (2->3)
                y = h0 * w3[k][0] + h1 * w3[k][1] + b3[k]
                out_ref[k, sl, :] = y.astype(out_ref.dtype)

    if n_chunks == 1:
        compute_chunk(0)
    else:
        def body(c, carry):
            compute_chunk(pl.multiple_of(c * chunk, chunk))
            return carry
        lax.fori_loop(0, n_chunks, body, 0)


def mlp_forward(x, params, embedding=False, batch_tile=32768):
    """Pallas MLP forward matching the PyTorch module.

    x      : [N, 2] float32 (or bfloat16)
    params : PyTorch-convention dict:
             layer1.weight (16,2), layer1.bias (16,)
             layer2.weight (2,16), layer2.bias (2,)
             FC.weight     (3,2),  FC.bias     (3,)
    """
    n, in_dim = x.shape
    assert in_dim == 2
    out_dim = 2 if embedding else 3

    # ---- pack the 91 parameter scalars into one small f32 SMEM buffer ------
    packed = jnp.concatenate([
        params["layer1.weight"].reshape(-1),   # 32
        params["layer1.bias"].reshape(-1),     # 16
        params["layer2.weight"].reshape(-1),   # 32
        params["layer2.bias"].reshape(-1),     # 2
        params["FC.weight"].reshape(-1),       # 6
        params["FC.bias"].reshape(-1),         # 3
    ]).astype(jnp.float32)
    assert packed.shape[0] == _NPARAMS

    # ---- row tiling ---------------------------------------------------------
    batch_tile = max(_MIN_ROWS, (int(batch_tile) // _MIN_ROWS) * _MIN_ROWS)
    n_min = pl.cdiv(n, _MIN_ROWS) * _MIN_ROWS          # N rounded to 1024
    tile_rows = min(batch_tile, n_min)                 # rows per grid step
    n_pad = pl.cdiv(n, tile_rows) * tile_rows
    grid = (n_pad // tile_rows,)

    tg = tile_rows // _LANE                 # sublane-rows per grid step (mult of 8)
    chunk = math.gcd(tg, 64)                # register-friendly inner chunk
    n_chunks = tg // chunk

    # ---- feature-major (lane-dense) layout: (2, n_pad/128, 128) -------------
    if n_pad != n:
        x = jnp.pad(x, ((0, n_pad - n), (0, 0)))
    x_fm = x.T.reshape(2, n_pad // _LANE, _LANE)

    kernel = functools.partial(_mlp_kernel, embedding=embedding,
                               chunk=chunk, n_chunks=n_chunks)

    itemsize = jnp.dtype(x.dtype).itemsize
    flops = n_pad * (2 * 2 * 16 + 2 * 16 * 2 + (0 if embedding else 2 * 2 * 3))
    cost = pl.CostEstimate(
        flops=flops, transcendentals=0,
        bytes_accessed=n_pad * (2 + out_dim) * itemsize + _NPARAMS * 4)

    out_fm = pl.pallas_call(
        kernel,
        out_shape=jax.ShapeDtypeStruct((out_dim, n_pad // _LANE, _LANE), x.dtype),
        grid_spec=pltpu.PrefetchScalarGridSpec(
            num_scalar_prefetch=0,
            grid=grid,
            in_specs=[
                # Tiny packed params live in SMEM (scalar reads, no per-step
                # padded VMEM weight tiles).
                pl.BlockSpec(memory_space=pltpu.MemorySpace.SMEM),
                pl.BlockSpec((2, tg, _LANE), lambda i: (0, i, 0)),
            ],
            out_specs=pl.BlockSpec((out_dim, tg, _LANE), lambda i: (0, i, 0)),
        ),
        compiler_params=pltpu.CompilerParams(
            dimension_semantics=("parallel",)),   # megacore sharding on v7x
        cost_estimate=cost,
    )(packed, x_fm)

    # back to PyTorch layout [N, out_dim]
    return out_fm.reshape(out_dim, n_pad).T[:n]


def init_params(key):
    """Deterministic init mimicking nn.Linear default (uniform +-1/sqrt(fan_in))."""
    def linear(key, out_f, in_f):
        kw, kb = jax.random.split(key)
        bound = 1.0 / jnp.sqrt(in_f)
        w = jax.random.uniform(kw, (out_f, in_f), jnp.float32, -bound, bound)
        b = jax.random.uniform(kb, (out_f,), jnp.float32, -bound, bound)
        return w, b

    k1, k2, k3 = jax.random.split(key, 3)
    w1, b1 = linear(k1, 16, 2)
    w2, b2 = linear(k2, 2, 16)
    w3, b3 = linear(k3, 3, 2)
    return {
        "layer1.weight": w1, "layer1.bias": b1,
        "layer2.weight": w2, "layer2.bias": b2,
        "FC.weight": w3, "FC.bias": b3,
    }


def mlp_reference(x, params, embedding=False):
    hi = jax.lax.Precision.HIGHEST
    h = jnp.maximum(jnp.dot(x, params["layer1.weight"].T, precision=hi)
                    + params["layer1.bias"], 0.0)
    h = jnp.maximum(jnp.dot(h, params["layer2.weight"].T, precision=hi)
                    + params["layer2.bias"], 0.0)
    if not embedding:
        h = jnp.dot(h, params["FC.weight"].T, precision=hi) + params["FC.bias"]
    return h


if __name__ == "__main__":
    key = jax.random.PRNGKey(0)
    k_params, k_x1, k_x2 = jax.random.split(key, 3)
    params = init_params(k_params)

    # Small batch of 2-D points (exercises padding up to one 1024-row tile).
    x_small = jax.random.normal(k_x1, (8, 2), jnp.float32)
    out = jax.block_until_ready(mlp_forward(x_small, params, embedding=False))
    ref = mlp_reference(x_small, params, embedding=False)
    assert out.shape == (8, 3)
    assert jnp.allclose(out, ref, atol=1e-5, rtol=1e-5)

    # embedding=True path (returns the 2-D hidden features).
    emb = jax.block_until_ready(mlp_forward(x_small, params, embedding=True))
    assert jnp.allclose(emb, mlp_reference(x_small, params, embedding=True),
                        atol=1e-5, rtol=1e-5)

    # Ragged batch + small tile -> multi-step (pipelined / megacore) grid.
    x_mid = jax.random.normal(k_x2, (2500, 2), jnp.float32)
    out_mid = jax.block_until_ready(mlp_forward(x_mid, params, batch_tile=1024))
    assert jnp.allclose(out_mid, mlp_reference(x_mid, params), atol=1e-4, rtol=1e-4)

    # Batch large enough to trigger the in-kernel chunked fori_loop (tg > 64).
    x_big = jax.random.normal(k_x2, (20000, 2), jnp.float32)
    out_big = jax.block_until_ready(mlp_forward(x_big, params))
    assert jnp.allclose(out_big, mlp_reference(x_big, params), atol=1e-4, rtol=1e-4)

    print("KERNEL_OK")
</pallas_src>

<mosaic_0001>
module attributes {stable_mosaic.version = 11 : i64} {
  func.func @_mlp_kernel(%arg0: i32, %arg1: memref<91xf32, #tpu.memory_space<smem>>, %arg2: memref<2x8x128xf32, #tpu.memory_space<vmem>>, %arg3: memref<3x8x128xf32, #tpu.memory_space<vmem>>) attributes {dimension_semantics = [#tpu.dimension_semantics<parallel>], iteration_bounds = array<i64: 1>, scalar_prefetch = 0 : i64, scratch_operands = 0 : i64, tpu.core_type = #tpu.core_type<tc>, window_params = [{transform_indices = @transform_0, window_bounds = array<i64: 91>}, {transform_indices = @transform_1, window_bounds = array<i64: 2, 8, 128>}, {transform_indices = @transform_2, window_bounds = array<i64: 3, 8, 128>}]} {
    %c0 = arith.constant 0 : index
    %0 = memref.load %arg1[%c0] : memref<91xf32, #tpu.memory_space<smem>>
    %c1 = arith.constant 1 : index
    %1 = memref.load %arg1[%c1] : memref<91xf32, #tpu.memory_space<smem>>
    %c2 = arith.constant 2 : index
    %2 = memref.load %arg1[%c2] : memref<91xf32, #tpu.memory_space<smem>>
    %c3 = arith.constant 3 : index
    %3 = memref.load %arg1[%c3] : memref<91xf32, #tpu.memory_space<smem>>
    %c4 = arith.constant 4 : index
    %4 = memref.load %arg1[%c4] : memref<91xf32, #tpu.memory_space<smem>>
    %c5 = arith.constant 5 : index
    %5 = memref.load %arg1[%c5] : memref<91xf32, #tpu.memory_space<smem>>
    %c6 = arith.constant 6 : index
    %6 = memref.load %arg1[%c6] : memref<91xf32, #tpu.memory_space<smem>>
    %c7 = arith.constant 7 : index
    %7 = memref.load %arg1[%c7] : memref<91xf32, #tpu.memory_space<smem>>
    %c8 = arith.constant 8 : index
    %8 = memref.load %arg1[%c8] : memref<91xf32, #tpu.memory_space<smem>>
    %c9 = arith.constant 9 : index
    %9 = memref.load %arg1[%c9] : memref<91xf32, #tpu.memory_space<smem>>
    %c10 = arith.constant 10 : index
    %10 = memref.load %arg1[%c10] : memref<91xf32, #tpu.memory_space<smem>>
    %c11 = arith.constant 11 : index
    %11 = memref.load %arg1[%c11] : memref<91xf32, #tpu.memory_space<smem>>
    %c12 = arith.constant 12 : index
    %12 = memref.load %arg1[%c12] : memref<91xf32, #tpu.memory_space<smem>>
    %c13 = arith.constant 13 : index
    %13 = memref.load %arg1[%c13] : memref<91xf32, #tpu.memory_space<smem>>
    %c14 = arith.constant 14 : index
    %14 = memref.load %arg1[%c14] : memref<91xf32, #tpu.memory_space<smem>>
    %c15 = arith.constant 15 : index
    %15 = memref.load %arg1[%c15] : memref<91xf32, #tpu.memory_space<smem>>
    %c16 = arith.constant 16 : index
    %16 = memref.load %arg1[%c16] : memref<91xf32, #tpu.memory_space<smem>>
    %c17 = arith.constant 17 : index
    %17 = memref.load %arg1[%c17] : memref<91xf32, #tpu.memory_space<smem>>
    %c18 = arith.constant 18 : index
    %18 = memref.load %arg1[%c18] : memref<91xf32, #tpu.memory_space<smem>>
    %c19 = arith.constant 19 : index
    %19 = memref.load %arg1[%c19] : memref<91xf32, #tpu.memory_space<smem>>
    %c20 = arith.constant 20 : index
    %20 = memref.load %arg1[%c20] : memref<91xf32, #tpu.memory_space<smem>>
    %c21 = arith.constant 21 : index
    %21 = memref.load %arg1[%c21] : memref<91xf32, #tpu.memory_space<smem>>
    %c22 = arith.constant 22 : index
    %22 = memref.load %arg1[%c22] : memref<91xf32, #tpu.memory_space<smem>>
    %c23 = arith.constant 23 : index
    %23 = memref.load %arg1[%c23] : memref<91xf32, #tpu.memory_space<smem>>
    %c24 = arith.constant 24 : index
    %24 = memref.load %arg1[%c24] : memref<91xf32, #tpu.memory_space<smem>>
    %c25 = arith.constant 25 : index
    %25 = memref.load %arg1[%c25] : memref<91xf32, #tpu.memory_space<smem>>
    %c26 = arith.constant 26 : index
    %26 = memref.load %arg1[%c26] : memref<91xf32, #tpu.memory_space<smem>>
    %c27 = arith.constant 27 : index
    %27 = memref.load %arg1[%c27] : memref<91xf32, #tpu.memory_space<smem>>
    %c28 = arith.constant 28 : index
    %28 = memref.load %arg1[%c28] : memref<91xf32, #tpu.memory_space<smem>>
    %c29 = arith.constant 29 : index
    %29 = memref.load %arg1[%c29] : memref<91xf32, #tpu.memory_space<smem>>
    %c30 = arith.constant 30 : index
    %30 = memref.load %arg1[%c30] : memref<91xf32, #tpu.memory_space<smem>>
    %c31 = arith.constant 31 : index
    %31 = memref.load %arg1[%c31] : memref<91xf32, #tpu.memory_space<smem>>
    %c32 = arith.constant 32 : index
    %32 = memref.load %arg1[%c32] : memref<91xf32, #tpu.memory_space<smem>>
    %c33 = arith.constant 33 : index
    %33 = memref.load %arg1[%c33] : memref<91xf32, #tpu.memory_space<smem>>
    %c34 = arith.constant 34 : index
    %34 = memref.load %arg1[%c34] : memref<91xf32, #tpu.memory_space<smem>>
    %c35 = arith.constant 35 : index
    %35 = memref.load %arg1[%c35] : memref<91xf32, #tpu.memory_space<smem>>
    %c36 = arith.constant 36 : index
    %36 = memref.load %arg1[%c36] : memref<91xf32, #tpu.memory_space<smem>>
    %c37 = arith.constant 37 : index
    %37 = memref.load %arg1[%c37] : memref<91xf32, #tpu.memory_space<smem>>
    %c38 = arith.constant 38 : index
    %38 = memref.load %arg1[%c38] : memref<91xf32, #tpu.memory_space<smem>>
    %c39 = arith.constant 39 : index
    %39 = memref.load %arg1[%c39] : memref<91xf32, #tpu.memory_space<smem>>
    %c40 = arith.constant 40 : index
    %40 = memref.load %arg1[%c40] : memref<91xf32, #tpu.memory_space<smem>>
    %c41 = arith.constant 41 : index
    %41 = memref.load %arg1[%c41] : memref<91xf32, #tpu.memory_space<smem>>
    %c42 = arith.constant 42 : index
    %42 = memref.load %arg1[%c42] : memref<91xf32, #tpu.memory_space<smem>>
    %c43 = arith.constant 43 : index
    %43 = memref.load %arg1[%c43] : memref<91xf32, #tpu.memory_space<smem>>
    %c44 = arith.constant 44 : index
    %44 = memref.load %arg1[%c44] : memref<91xf32, #tpu.memory_space<smem>>
    %c45 = arith.constant 45 : index
    %45 = memref.load %arg1[%c45] : memref<91xf32, #tpu.memory_space<smem>>
    %c46 = arith.constant 46 : index
    %46 = memref.load %arg1[%c46] : memref<91xf32, #tpu.memory_space<smem>>
    %c47 = arith.constant 47 : index
    %47 = memref.load %arg1[%c47] : memref<91xf32, #tpu.memory_space<smem>>
    %c48 = arith.constant 48 : index
    %48 = memref.load %arg1[%c48] : memref<91xf32, #tpu.memory_space<smem>>
    %c49 = arith.constant 49 : index
    %49 = memref.load %arg1[%c49] : memref<91xf32, #tpu.memory_space<smem>>
    %c50 = arith.constant 50 : index
    %50 = memref.load %arg1[%c50] : memref<91xf32, #tpu.memory_space<smem>>
    %c51 = arith.constant 51 : index
    %51 = memref.load %arg1[%c51] : memref<91xf32, #tpu.memory_space<smem>>
    %c52 = arith.constant 52 : index
    %52 = memref.load %arg1[%c52] : memref<91xf32, #tpu.memory_space<smem>>
    %c53 = arith.constant 53 : index
    %53 = memref.load %arg1[%c53] : memref<91xf32, #tpu.memory_space<smem>>
    %c54 = arith.constant 54 : index
    %54 = memref.load %arg1[%c54] : memref<91xf32, #tpu.memory_space<smem>>
    %c55 = arith.constant 55 : index
    %55 = memref.load %arg1[%c55] : memref<91xf32, #tpu.memory_space<smem>>
    %c56 = arith.constant 56 : index
    %56 = memref.load %arg1[%c56] : memref<91xf32, #tpu.memory_space<smem>>
    %c57 = arith.constant 57 : index
    %57 = memref.load %arg1[%c57] : memref<91xf32, #tpu.memory_space<smem>>
    %c58 = arith.constant 58 : index
    %58 = memref.load %arg1[%c58] : memref<91xf32, #tpu.memory_space<smem>>
    %c59 = arith.constant 59 : index
    %59 = memref.load %arg1[%c59] : memref<91xf32, #tpu.memory_space<smem>>
    %c60 = arith.constant 60 : index
    %60 = memref.load %arg1[%c60] : memref<91xf32, #tpu.memory_space<smem>>
    %c61 = arith.constant 61 : index
    %61 = memref.load %arg1[%c61] : memref<91xf32, #tpu.memory_space<smem>>
    %c62 = arith.constant 62 : index
    %62 = memref.load %arg1[%c62] : memref<91xf32, #tpu.memory_space<smem>>
    %c63 = arith.constant 63 : index
    %63 = memref.load %arg1[%c63] : memref<91xf32, #tpu.memory_space<smem>>
    %c64 = arith.constant 64 : index
    %64 = memref.load %arg1[%c64] : memref<91xf32, #tpu.memory_space<smem>>
    %c65 = arith.constant 65 : index
    %65 = memref.load %arg1[%c65] : memref<91xf32, #tpu.memory_space<smem>>
    %c66 = arith.constant 66 : index
    %66 = memref.load %arg1[%c66] : memref<91xf32, #tpu.memory_space<smem>>
    %c67 = arith.constant 67 : index
    %67 = memref.load %arg1[%c67] : memref<91xf32, #tpu.memory_space<smem>>
    %c68 = arith.constant 68 : index
    %68 = memref.load %arg1[%c68] : memref<91xf32, #tpu.memory_space<smem>>
    %c69 = arith.constant 69 : index
    %69 = memref.load %arg1[%c69] : memref<91xf32, #tpu.memory_space<smem>>
    %c70 = arith.constant 70 : index
    %70 = memref.load %arg1[%c70] : memref<91xf32, #tpu.memory_space<smem>>
    %c71 = arith.constant 71 : index
    %71 = memref.load %arg1[%c71] : memref<91xf32, #tpu.memory_space<smem>>
    %c72 = arith.constant 72 : index
    %72 = memref.load %arg1[%c72] : memref<91xf32, #tpu.memory_space<smem>>
    %c73 = arith.constant 73 : index
    %73 = memref.load %arg1[%c73] : memref<91xf32, #tpu.memory_space<smem>>
    %c74 = arith.constant 74 : index
    %74 = memref.load %arg1[%c74] : memref<91xf32, #tpu.memory_space<smem>>
    %c75 = arith.constant 75 : index
    %75 = memref.load %arg1[%c75] : memref<91xf32, #tpu.memory_space<smem>>
    %c76 = arith.constant 76 : index
    %76 = memref.load %arg1[%c76] : memref<91xf32, #tpu.memory_space<smem>>
    %c77 = arith.constant 77 : index
    %77 = memref.load %arg1[%c77] : memref<91xf32, #tpu.memory_space<smem>>
    %c78 = arith.constant 78 : index
    %78 = memref.load %arg1[%c78] : memref<91xf32, #tpu.memory_space<smem>>
    %c79 = arith.constant 79 : index
    %79 = memref.load %arg1[%c79] : memref<91xf32, #tpu.memory_space<smem>>
    %c80 = arith.constant 80 : index
    %80 = memref.load %arg1[%c80] : memref<91xf32, #tpu.memory_space<smem>>
    %c81 = arith.constant 81 : index
    %81 = memref.load %arg1[%c81] : memref<91xf32, #tpu.memory_space<smem>>
    %c82 = arith.constant 82 : index
    %82 = memref.load %arg1[%c82] : memref<91xf32, #tpu.memory_space<smem>>
    %c83 = arith.constant 83 : index
    %83 = memref.load %arg1[%c83] : memref<91xf32, #tpu.memory_space<smem>>
    %c84 = arith.constant 84 : index
    %84 = memref.load %arg1[%c84] : memref<91xf32, #tpu.memory_space<smem>>
    %c85 = arith.constant 85 : index
    %85 = memref.load %arg1[%c85] : memref<91xf32, #tpu.memory_space<smem>>
    %c86 = arith.constant 86 : index
    %86 = memref.load %arg1[%c86] : memref<91xf32, #tpu.memory_space<smem>>
    %c87 = arith.constant 87 : index
    %87 = memref.load %arg1[%c87] : memref<91xf32, #tpu.memory_space<smem>>
    %c88 = arith.constant 88 : index
    %88 = memref.load %arg1[%c88] : memref<91xf32, #tpu.memory_space<smem>>
    %c89 = arith.constant 89 : index
    %89 = memref.load %arg1[%c89] : memref<91xf32, #tpu.memory_space<smem>>
    %c90 = arith.constant 90 : index
    %90 = memref.load %arg1[%c90] : memref<91xf32, #tpu.memory_space<smem>>
    %c0_0 = arith.constant 0 : index
    %c0_1 = arith.constant 0 : index
    %c0_2 = arith.constant 0 : index
    %91 = vector.load %arg2[%c0_0, %c0_1, %c0_2] : memref<2x8x128xf32, #tpu.memory_space<vmem>>, vector<1x8x128xf32>
    %92 = vector.shape_cast %91 : vector<1x8x128xf32> to vector<8x128xf32>
    %c1_3 = arith.constant 1 : index
    %c0_4 = arith.constant 0 : index
    %c0_5 = arith.constant 0 : index
    %93 = vector.load %arg2[%c1_3, %c0_4, %c0_5] : memref<2x8x128xf32, #tpu.memory_space<vmem>>, vector<1x8x128xf32>
    %94 = vector.shape_cast %93 : vector<1x8x128xf32> to vector<8x128xf32>
    %cst = arith.constant 0.000000e+00 : f32
    %95 = vector.broadcast %cst : f32 to vector<8x128xf32>
    %96 = vector.broadcast %80 : f32 to vector<8x128xf32>
    %97 = arith.addf %95, %96 : vector<8x128xf32>
    %cst_6 = arith.constant 0.000000e+00 : f32
    %98 = vector.broadcast %cst_6 : f32 to vector<8x128xf32>
    %99 = vector.broadcast %81 : f32 to vector<8x128xf32>
    %100 = arith.addf %98, %99 : vector<8x128xf32>
    %101 = vector.broadcast %0 : f32 to vector<8x128xf32>
    %102 = arith.mulf %92, %101 : vector<8x128xf32>
    %103 = vector.broadcast %1 : f32 to vector<8x128xf32>
    %104 = arith.mulf %94, %103 : vector<8x128xf32>
    %105 = arith.addf %102, %104 : vector<8x128xf32>
    %106 = vector.broadcast %32 : f32 to vector<8x128xf32>
    %107 = arith.addf %105, %106 : vector<8x128xf32>
    %cst_7 = arith.constant 0.000000e+00 : f32
    %108 = vector.broadcast %cst_7 : f32 to vector<8x128xf32>
    %109 = arith.maximumf %107, %108 : vector<8x128xf32>
    %110 = vector.broadcast %48 : f32 to vector<8x128xf32>
    %111 = arith.mulf %109, %110 : vector<8x128xf32>
    %112 = arith.addf %97, %111 : vector<8x128xf32>
    %113 = vector.broadcast %64 : f32 to vector<8x128xf32>
    %114 = arith.mulf %109, %113 : vector<8x128xf32>
    %115 = arith.addf %100, %114 : vector<8x128xf32>
    %116 = vector.broadcast %2 : f32 to vector<8x128xf32>
    %117 = arith.mulf %92, %116 : vector<8x128xf32>
    %118 = vector.broadcast %3 : f32 to vector<8x128xf32>
    %119 = arith.mulf %94, %118 : vector<8x128xf32>
    %120 = arith.addf %117, %119 : vector<8x128xf32>
    %121 = vector.broadcast %33 : f32 to vector<8x128xf32>
    %122 = arith.addf %120, %121 : vector<8x128xf32>
    %cst_8 = arith.constant 0.000000e+00 : f32
    %123 = vector.broadcast %cst_8 : f32 to vector<8x128xf32>
    %124 = arith.maximumf %122, %123 : vector<8x128xf32>
    %125 = vector.broadcast %49 : f32 to vector<8x128xf32>
    %126 = arith.mulf %124, %125 : vector<8x128xf32>
    %127 = arith.addf %112, %126 : vector<8x128xf32>
    %128 = vector.broadcast %65 : f32 to vector<8x128xf32>
    %129 = arith.mulf %124, %128 : vector<8x128xf32>
    %130 = arith.addf %115, %129 : vector<8x128xf32>
    %131 = vector.broadcast %4 : f32 to vector<8x128xf32>
    %132 = arith.mulf %92, %131 : vector<8x128xf32>
    %133 = vector.broadcast %5 : f32 to vector<8x128xf32>
    %134 = arith.mulf %94, %133 : vector<8x128xf32>
    %135 = arith.addf %132, %134 : vector<8x128xf32>
    %136 = vector.broadcast %34 : f32 to vector<8x128xf32>
    %137 = arith.addf %135, %136 : vector<8x128xf32>
    %cst_9 = arith.constant 0.000000e+00 : f32
    %138 = vector.broadcast %cst_9 : f32 to vector<8x128xf32>
    %139 = arith.maximumf %137, %138 : vector<8x128xf32>
    %140 = vector.broadcast %50 : f32 to vector<8x128xf32>
    %141 = arith.mulf %139, %140 : vector<8x128xf32>
    %142 = arith.addf %127, %141 : vector<8x128xf32>
    %143 = vector.broadcast %66 : f32 to vector<8x128xf32>
    %144 = arith.mulf %139, %143 : vector<8x128xf32>
    %145 = arith.addf %130, %144 : vector<8x128xf32>
    %146 = vector.broadcast %6 : f32 to vector<8x128xf32>
    %147 = arith.mulf %92, %146 : vector<8x128xf32>
    %148 = vector.broadcast %7 : f32 to vector<8x128xf32>
    %149 = arith.mulf %94, %148 : vector<8x128xf32>
    %150 = arith.addf %147, %149 : vector<8x128xf32>
    %151 = vector.broadcast %35 : f32 to vector<8x128xf32>
    %152 = arith.addf %150, %151 : vector<8x128xf32>
    %cst_10 = arith.constant 0.000000e+00 : f32
    %153 = vector.broadcast %cst_10 : f32 to vector<8x128xf32>
    %154 = arith.maximumf %152, %153 : vector<8x128xf32>
    %155 = vector.broadcast %51 : f32 to vector<8x128xf32>
    %156 = arith.mulf %154, %155 : vector<8x128xf32>
    %157 = arith.addf %142, %156 : vector<8x128xf32>
    %158 = vector.broadcast %67 : f32 to vector<8x128xf32>
    %159 = arith.mulf %154, %158 : vector<8x128xf32>
    %160 = arith.addf %145, %159 : vector<8x128xf32>
    %161 = vector.broadcast %8 : f32 to vector<8x128xf32>
    %162 = arith.mulf %92, %161 : vector<8x128xf32>
    %163 = vector.broadcast %9 : f32 to vector<8x128xf32>
    %164 = arith.mulf %94, %163 : vector<8x128xf32>
    %165 = arith.addf %162, %164 : vector<8x128xf32>
    %166 = vector.broadcast %36 : f32 to vector<8x128xf32>
    %167 = arith.addf %165, %166 : vector<8x128xf32>
    %cst_11 = arith.constant 0.000000e+00 : f32
    %168 = vector.broadcast %cst_11 : f32 to vector<8x128xf32>
    %169 = arith.maximumf %167, %168 : vector<8x128xf32>
    %170 = vector.broadcast %52 : f32 to vector<8x128xf32>
    %171 = arith.mulf %169, %170 : vector<8x128xf32>
    %172 = arith.addf %157, %171 : vector<8x128xf32>
    %173 = vector.broadcast %68 : f32 to vector<8x128xf32>
    %174 = arith.mulf %169, %173 : vector<8x128xf32>
    %175 = arith.addf %160, %174 : vector<8x128xf32>
    %176 = vector.broadcast %10 : f32 to vector<8x128xf32>
    %177 = arith.mulf %92, %176 : vector<8x128xf32>
    %178 = vector.broadcast %11 : f32 to vector<8x128xf32>
    %179 = arith.mulf %94, %178 : vector<8x128xf32>
    %180 = arith.addf %177, %179 : vector<8x128xf32>
    %181 = vector.broadcast %37 : f32 to vector<8x128xf32>
    %182 = arith.addf %180, %181 : vector<8x128xf32>
    %cst_12 = arith.constant 0.000000e+00 : f32
    %183 = vector.broadcast %cst_12 : f32 to vector<8x128xf32>
    %184 = arith.maximumf %182, %183 : vector<8x128xf32>
    %185 = vector.broadcast %53 : f32 to vector<8x128xf32>
    %186 = arith.mulf %184, %185 : vector<8x128xf32>
    %187 = arith.addf %172, %186 : vector<8x128xf32>
    %188 = vector.broadcast %69 : f32 to vector<8x128xf32>
    %189 = arith.mulf %184, %188 : vector<8x128xf32>
    %190 = arith.addf %175, %189 : vector<8x128xf32>
    %191 = vector.broadcast %12 : f32 to vector<8x128xf32>
    %192 = arith.mulf %92, %191 : vector<8x128xf32>
    %193 = vector.broadcast %13 : f32 to vector<8x128xf32>
    %194 = arith.mulf %94, %193 : vector<8x128xf32>
    %195 = arith.addf %192, %194 : vector<8x128xf32>
    %196 = vector.broadcast %38 : f32 to vector<8x128xf32>
    %197 = arith.addf %195, %196 : vector<8x128xf32>
    %cst_13 = arith.constant 0.000000e+00 : f32
    %198 = vector.broadcast %cst_13 : f32 to vector<8x128xf32>
    %199 = arith.maximumf %197, %198 : vector<8x128xf32>
    %200 = vector.broadcast %54 : f32 to vector<8x128xf32>
    %201 = arith.mulf %199, %200 : vector<8x128xf32>
    %202 = arith.addf %187, %201 : vector<8x128xf32>
    %203 = vector.broadcast %70 : f32 to vector<8x128xf32>
    %204 = arith.mulf %199, %203 : vector<8x128xf32>
    %205 = arith.addf %190, %204 : vector<8x128xf32>
    %206 = vector.broadcast %14 : f32 to vector<8x128xf32>
    %207 = arith.mulf %92, %206 : vector<8x128xf32>
    %208 = vector.broadcast %15 : f32 to vector<8x128xf32>
    %209 = arith.mulf %94, %208 : vector<8x128xf32>
    %210 = arith.addf %207, %209 : vector<8x128xf32>
    %211 = vector.broadcast %39 : f32 to vector<8x128xf32>
    %212 = arith.addf %210, %211 : vector<8x128xf32>
    %cst_14 = arith.constant 0.000000e+00 : f32
    %213 = vector.broadcast %cst_14 : f32 to vector<8x128xf32>
    %214 = arith.maximumf %212, %213 : vector<8x128xf32>
    %215 = vector.broadcast %55 : f32 to vector<8x128xf32>
    %216 = arith.mulf %214, %215 : vector<8x128xf32>
    %217 = arith.addf %202, %216 : vector<8x128xf32>
    %218 = vector.broadcast %71 : f32 to vector<8x128xf32>
    %219 = arith.mulf %214, %218 : vector<8x128xf32>
    %220 = arith.addf %205, %219 : vector<8x128xf32>
    %221 = vector.broadcast %16 : f32 to vector<8x128xf32>
    %222 = arith.mulf %92, %221 : vector<8x128xf32>
    %223 = vector.broadcast %17 : f32 to vector<8x128xf32>
    %224 = arith.mulf %94, %223 : vector<8x128xf32>
    %225 = arith.addf %222, %224 : vector<8x128xf32>
    %226 = vector.broadcast %40 : f32 to vector<8x128xf32>
    %227 = arith.addf %225, %226 : vector<8x128xf32>
    %cst_15 = arith.constant 0.000000e+00 : f32
    %228 = vector.broadcast %cst_15 : f32 to vector<8x128xf32>
    %229 = arith.maximumf %227, %228 : vector<8x128xf32>
    %230 = vector.broadcast %56 : f32 to vector<8x128xf32>
    %231 = arith.mulf %229, %230 : vector<8x128xf32>
    %232 = arith.addf %217, %231 : vector<8x128xf32>
    %233 = vector.broadcast %72 : f32 to vector<8x128xf32>
    %234 = arith.mulf %229, %233 : vector<8x128xf32>
    %235 = arith.addf %220, %234 : vector<8x128xf32>
    %236 = vector.broadcast %18 : f32 to vector<8x128xf32>
    %237 = arith.mulf %92, %236 : vector<8x128xf32>
    %238 = vector.broadcast %19 : f32 to vector<8x128xf32>
    %239 = arith.mulf %94, %238 : vector<8x128xf32>
    %240 = arith.addf %237, %239 : vector<8x128xf32>
    %241 = vector.broadcast %41 : f32 to vector<8x128xf32>
    %242 = arith.addf %240, %241 : vector<8x128xf32>
    %cst_16 = arith.constant 0.000000e+00 : f32
    %243 = vector.broadcast %cst_16 : f32 to vector<8x128xf32>
    %244 = arith.maximumf %242, %243 : vector<8x128xf32>
    %245 = vector.broadcast %57 : f32 to vector<8x128xf32>
    %246 = arith.mulf %244, %245 : vector<8x128xf32>
    %247 = arith.addf %232, %246 : vector<8x128xf32>
    %248 = vector.broadcast %73 : f32 to vector<8x128xf32>
    %249 = arith.mulf %244, %248 : vector<8x128xf32>
    %250 = arith.addf %235, %249 : vector<8x128xf32>
    %251 = vector.broadcast %20 : f32 to vector<8x128xf32>
    %252 = arith.mulf %92, %251 : vector<8x128xf32>
    %253 = vector.broadcast %21 : f32 to vector<8x128xf32>
    %254 = arith.mulf %94, %253 : vector<8x128xf32>
    %255 = arith.addf %252, %254 : vector<8x128xf32>
    %256 = vector.broadcast %42 : f32 to vector<8x128xf32>
    %257 = arith.addf %255, %256 : vector<8x128xf32>
    %cst_17 = arith.constant 0.000000e+00 : f32
    %258 = vector.broadcast %cst_17 : f32 to vector<8x128xf32>
    %259 = arith.maximumf %257, %258 : vector<8x128xf32>
    %260 = vector.broadcast %58 : f32 to vector<8x128xf32>
    %261 = arith.mulf %259, %260 : vector<8x128xf32>
    %262 = arith.addf %247, %261 : vector<8x128xf32>
    %263 = vector.broadcast %74 : f32 to vector<8x128xf32>
    %264 = arith.mulf %259, %263 : vector<8x128xf32>
    %265 = arith.addf %250, %264 : vector<8x128xf32>
    %266 = vector.broadcast %22 : f32 to vector<8x128xf32>
    %267 = arith.mulf %92, %266 : vector<8x128xf32>
    %268 = vector.broadcast %23 : f32 to vector<8x128xf32>
    %269 = arith.mulf %94, %268 : vector<8x128xf32>
    %270 = arith.addf %267, %269 : vector<8x128xf32>
    %271 = vector.broadcast %43 : f32 to vector<8x128xf32>
    %272 = arith.addf %270, %271 : vector<8x128xf32>
    %cst_18 = arith.constant 0.000000e+00 : f32
    %273 = vector.broadcast %cst_18 : f32 to vector<8x128xf32>
    %274 = arith.maximumf %272, %273 : vector<8x128xf32>
    %275 = vector.broadcast %59 : f32 to vector<8x128xf32>
    %276 = arith.mulf %274, %275 : vector<8x128xf32>
    %277 = arith.addf %262, %276 : vector<8x128xf32>
    %278 = vector.broadcast %75 : f32 to vector<8x128xf32>
    %279 = arith.mulf %274, %278 : vector<8x128xf32>
    %280 = arith.addf %265, %279 : vector<8x128xf32>
    %281 = vector.broadcast %24 : f32 to vector<8x128xf32>
    %282 = arith.mulf %92, %281 : vector<8x128xf32>
    %283 = vector.broadcast %25 : f32 to vector<8x128xf32>
    %284 = arith.mulf %94, %283 : vector<8x128xf32>
    %285 = arith.addf %282, %284 : vector<8x128xf32>
    %286 = vector.broadcast %44 : f32 to vector<8x128xf32>
    %287 = arith.addf %285, %286 : vector<8x128xf32>
    %cst_19 = arith.constant 0.000000e+00 : f32
    %288 = vector.broadcast %cst_19 : f32 to vector<8x128xf32>
    %289 = arith.maximumf %287, %288 : vector<8x128xf32>
    %290 = vector.broadcast %60 : f32 to vector<8x128xf32>
    %291 = arith.mulf %289, %290 : vector<8x128xf32>
    %292 = arith.addf %277, %291 : vector<8x128xf32>
    %293 = vector.broadcast %76 : f32 to vector<8x128xf32>
    %294 = arith.mulf %289, %293 : vector<8x128xf32>
    %295 = arith.addf %280, %294 : vector<8x128xf32>
    %296 = vector.broadcast %26 : f32 to vector<8x128xf32>
    %297 = arith.mulf %92, %296 : vector<8x128xf32>
    %298 = vector.broadcast %27 : f32 to vector<8x128xf32>
    %299 = arith.mulf %94, %298 : vector<8x128xf32>
    %300 = arith.addf %297, %299 : vector<8x128xf32>
    %301 = vector.broadcast %45 : f32 to vector<8x128xf32>
    %302 = arith.addf %300, %301 : vector<8x128xf32>
    %cst_20 = arith.constant 0.000000e+00 : f32
    %303 = vector.broadcast %cst_20 : f32 to vector<8x128xf32>
    %304 = arith.maximumf %302, %303 : vector<8x128xf32>
    %305 = vector.broadcast %61 : f32 to vector<8x128xf32>
    %306 = arith.mulf %304, %305 : vector<8x128xf32>
    %307 = arith.addf %292, %306 : vector<8x128xf32>
    %308 = vector.broadcast %77 : f32 to vector<8x128xf32>
    %309 = arith.mulf %304, %308 : vector<8x128xf32>
    %310 = arith.addf %295, %309 : vector<8x128xf32>
    %311 = vector.broadcast %28 : f32 to vector<8x128xf32>
    %312 = arith.mulf %92, %311 : vector<8x128xf32>
    %313 = vector.broadcast %29 : f32 to vector<8x128xf32>
    %314 = arith.mulf %94, %313 : vector<8x128xf32>
    %315 = arith.addf %312, %314 : vector<8x128xf32>
    %316 = vector.broadcast %46 : f32 to vector<8x128xf32>
    %317 = arith.addf %315, %316 : vector<8x128xf32>
    %cst_21 = arith.constant 0.000000e+00 : f32
    %318 = vector.broadcast %cst_21 : f32 to vector<8x128xf32>
    %319 = arith.maximumf %317, %318 : vector<8x128xf32>
    %320 = vector.broadcast %62 : f32 to vector<8x128xf32>
    %321 = arith.mulf %319, %320 : vector<8x128xf32>
    %322 = arith.addf %307, %321 : vector<8x128xf32>
    %323 = vector.broadcast %78 : f32 to vector<8x128xf32>
    %324 = arith.mulf %319, %323 : vector<8x128xf32>
    %325 = arith.addf %310, %324 : vector<8x128xf32>
    %326 = vector.broadcast %30 : f32 to vector<8x128xf32>
    %327 = arith.mulf %92, %326 : vector<8x128xf32>
    %328 = vector.broadcast %31 : f32 to vector<8x128xf32>
    %329 = arith.mulf %94, %328 : vector<8x128xf32>
    %330 = arith.addf %327, %329 : vector<8x128xf32>
    %331 = vector.broadcast %47 : f32 to vector<8x128xf32>
    %332 = arith.addf %330, %331 : vector<8x128xf32>
    %cst_22 = arith.constant 0.000000e+00 : f32
    %333 = vector.broadcast %cst_22 : f32 to vector<8x128xf32>
    %334 = arith.maximumf %332, %333 : vector<8x128xf32>
    %335 = vector.broadcast %63 : f32 to vector<8x128xf32>
    %336 = arith.mulf %334, %335 : vector<8x128xf32>
    %337 = arith.addf %322, %336 : vector<8x128xf32>
    %338 = vector.broadcast %79 : f32 to vector<8x128xf32>
    %339 = arith.mulf %334, %338 : vector<8x128xf32>
    %340 = arith.addf %325, %339 : vector<8x128xf32>
    %cst_23 = arith.constant 0.000000e+00 : f32
    %341 = vector.broadcast %cst_23 : f32 to vector<8x128xf32>
    %342 = arith.maximumf %337, %341 : vector<8x128xf32>
    %cst_24 = arith.constant 0.000000e+00 : f32
    %343 = vector.broadcast %cst_24 : f32 to vector<8x128xf32>
    %344 = arith.maximumf %340, %343 : vector<8x128xf32>
    %345 = vector.broadcast %82 : f32 to vector<8x128xf32>
    %346 = arith.mulf %342, %345 : vector<8x128xf32>
    %347 = vector.broadcast %83 : f32 to vector<8x128xf32>
    %348 = arith.mulf %344, %347 : vector<8x128xf32>
    %349 = arith.addf %346, %348 : vector<8x128xf32>
    %350 = vector.broadcast %88 : f32 to vector<8x128xf32>
    %351 = arith.addf %349, %350 : vector<8x128xf32>
    %c0_25 = arith.constant 0 : index
    %c0_26 = arith.constant 0 : index
    %c0_27 = arith.constant 0 : index
    %352 = vector.load %arg3[%c0_25, %c0_26, %c0_27] : memref<3x8x128xf32, #tpu.memory_space<vmem>>, vector<1x8x128xf32>
    %353 = vector.shape_cast %352 : vector<1x8x128xf32> to vector<8x128xf32>
    %354 = vector.shape_cast %351 : vector<8x128xf32> to vector<1x8x128xf32>
    tpu.vector_store %arg3[%c0_25, %c0_26, %c0_27], %354 {strides = array<i32>} : memref<3x8x128xf32, #tpu.memory_space<vmem>>, vector<1x8x128xf32>,
    %355 = vector.broadcast %84 : f32 to vector<8x128xf32>
    %356 = arith.mulf %342, %355 : vector<8x128xf32>
    %357 = vector.broadcast %85 : f32 to vector<8x128xf32>
    %358 = arith.mulf %344, %357 : vector<8x128xf32>
    %359 = arith.addf %356, %358 : vector<8x128xf32>
    %360 = vector.broadcast %89 : f32 to vector<8x128xf32>
    %361 = arith.addf %359, %360 : vector<8x128xf32>
    %c1_28 = arith.constant 1 : index
    %c0_29 = arith.constant 0 : index
    %c0_30 = arith.constant 0 : index
    %362 = vector.load %arg3[%c1_28, %c0_29, %c0_30] : memref<3x8x128xf32, #tpu.memory_space<vmem>>, vector<1x8x128xf32>
    %363 = vector.shape_cast %362 : vector<1x8x128xf32> to vector<8x128xf32>
    %364 = vector.shape_cast %361 : vector<8x128xf32> to vector<1x8x128xf32>
    tpu.vector_store %arg3[%c1_28, %c0_29, %c0_30], %364 {strides = array<i32>} : memref<3x8x128xf32, #tpu.memory_space<vmem>>, vector<1x8x128xf32>,
    %365 = vector.broadcast %86 : f32 to vector<8x128xf32>
    %366 = arith.mulf %342, %365 : vector<8x128xf32>
    %367 = vector.broadcast %87 : f32 to vector<8x128xf32>
    %368 = arith.mulf %344, %367 : vector<8x128xf32>
    %369 = arith.addf %366, %368 : vector<8x128xf32>
    %370 = vector.broadcast %90 : f32 to vector<8x128xf32>
    %371 = arith.addf %369, %370 : vector<8x128xf32>
    %c2_31 = arith.constant 2 : index
    %c0_32 = arith.constant 0 : index
    %c0_33 = arith.constant 0 : index
    %372 = vector.load %arg3[%c2_31, %c0_32, %c0_33] : memref<3x8x128xf32, #tpu.memory_space<vmem>>, vector<1x8x128xf32>
    %373 = vector.shape_cast %372 : vector<1x8x128xf32> to vector<8x128xf32>
    %374 = vector.shape_cast %371 : vector<8x128xf32> to vector<1x8x128xf32>
    tpu.vector_store %arg3[%c2_31, %c0_32, %c0_33], %374 {strides = array<i32>} : memref<3x8x128xf32, #tpu.memory_space<vmem>>, vector<1x8x128xf32>,
    return
  }
  func.func @transform_0(%arg0: i32) -> i32 {
    %c0_i32 = arith.constant 0 : i32
    %c0_i32_0 = arith.constant 0 : i32
    return %c0_i32 : i32
  }
  func.func @transform_1(%arg0: i32) -> (i32, i32, i32) {
    %c0_i32 = arith.constant 0 : i32
    %c0_i32_0 = arith.constant 0 : i32
    %c0_i32_1 = arith.constant 0 : i32
    return %c0_i32, %arg0, %c0_i32_0 : i32, i32, i32
  }
  func.func @transform_2(%arg0: i32) -> (i32, i32, i32) {
    %c0_i32 = arith.constant 0 : i32
    %c0_i32_0 = arith.constant 0 : i32
    %c0_i32_1 = arith.constant 0 : i32
    return %c0_i32, %arg0, %c0_i32_0 : i32, i32, i32
  }
}

</mosaic_0001>

<llo_original>
// kernel: tpu_custom_call.1
$region0: #{tpu_custom_call.1}
  #allocation0 [shape = 'u32[]', space=smem, size = 0x4, offset = 0x4, fixed_abs, tag = 'smem constant byte address 0x4 - core index']
  #allocation1 [shape = 'u32[144,128]{1,0:T(1,128)}', space=vmem, size = 0x12000, scoped, tag = 'internal scratch']
  %s0 = inlined_call_operand.hbm [shape: f32[91], index: 0, kind: input, shape index: {}]
  %s1 = inlined_call_operand.hbm [shape: f32[2,8,128], index: 1, kind: input, shape index: {}]
  %s2 = inlined_call_operand.hbm [shape: f32[3,8,128], index: 2, kind: output, shape index: {}]
  %s3 = sld [smem:[#allocation0]]
  $region26: #{tpu_custom_call.1} parent=0
    _
  %s5 = ssub.s32 1, %s3
  %s6 = scalar_select 0, %s5, %s3
  $region1: #{tpu_custom_call.1} parent=0
    #allocation2 [shape = 'u8[512]{0}', space=smem, size = 0x200, scoped, tag = 'input window, operand 0, single buffered']
    #allocation3 [shape = 's32[1]{0}', space=sflag, size = 0x4, scoped, tag = 'scoped memory for tpu_custom_call.1']
    #allocation4 [shape = 's32[1]{0}', space=sflag, size = 0x4, scoped, tag = 'scoped memory for tpu_custom_call.1']
    #allocation5 [shape = 's32[1]{0}', space=sflag, size = 0x4, scoped, tag = 'scoped memory for tpu_custom_call.1']
    #allocation6 [shape = 'u8[8192]{0}', space=vmem, size = 0x2000, scoped, tag = 'input window, operand 1, single buffered']
    #allocation7 [shape = 'u8[12288]{0}', space=vmem, size = 0x3000, scoped, tag = 'output window, operand 0, single buffered']
    %7 = vsyncpa [#allocation5], 0
    %8 = vsyncpa [#allocation3], 0
    %9 = vsyncpa [#allocation4], 0
    // Predicated region
    $region2: #{tpu_custom_call.1} parent=1 // pred_check
      _
    $region3: #{tpu_custom_call.1} parent=1 // pred_check_branch
      %11 = sbr.rel (0) target = $region5
    $region4: #{tpu_custom_call.1} parent=1 // pred_region
      %s13 = ssub.s32 16, 16
      %14 = vsyncadd [#allocation5], %s13
      %17 = dma.hbm_to_smem %s0, 16, [#allocation2], [#allocation5]
    $region5: #{tpu_custom_call.1} parent=1 // pred_fallthru
      _
    // Predicated region
    $region6: #{tpu_custom_call.1} parent=1 // pred_check
      _
    $region7: #{tpu_custom_call.1} parent=1 // pred_check_branch
      %19 = sbr.rel (0) target = $region9
    $region8: #{tpu_custom_call.1} parent=1 // pred_region
      %s21 = ssub.s32 256, 256
      %22 = vsyncadd [#allocation3], %s21
      %s23 = sshll.u32 [#allocation6], 4
      %s24 = int_to_ptr.vmem [resolvable:$true] %s23
      %29 = dma.hbm_to_vmem [thread:$0]  %s1, 256, %s24, [#allocation3], 128, 128, 8
    $region9: #{tpu_custom_call.1} parent=1 // pred_fallthru
      _
    // Predicated region
    $region10: #{tpu_custom_call.1} parent=1 // pred_check
      _
    $region11: #{tpu_custom_call.1} parent=1 // pred_check_branch
      %31 = sbr.rel (0) target = $region13
    $region12: #{tpu_custom_call.1} parent=1 // pred_region
      %32 = dma.done [#allocation5], 16
    $region13: #{tpu_custom_call.1} parent=1 // pred_fallthru
      _
    // Predicated region
    $region14: #{tpu_custom_call.1} parent=1 // pred_check
      _
    $region15: #{tpu_custom_call.1} parent=1 // pred_check_branch
      %34 = sbr.rel (0) target = $region17
    $region16: #{tpu_custom_call.1} parent=1 // pred_region
      %35 = dma.done [#allocation3], 256
    $region17: #{tpu_custom_call.1} parent=1 // pred_fallthru
      _
    %36 = sfence
    %s37 = sld [smem:[#allocation2]]
    %s38 = sld [smem:[#allocation2 + $0x1]]
    %s39 = sld [smem:[#allocation2 + $0x2]]
    %s40 = sld [smem:[#allocation2 + $0x3]]
    %s41 = sld [smem:[#allocation2 + $0x4]]
    %s42 = sld [smem:[#allocation2 + $0x5]]
    %s43 = sld [smem:[#allocation2 + $0x6]]
    %s44 = sld [smem:[#allocation2 + $0x7]]
    %s45 = sld [smem:[#allocation2 + $0x8]]
    %s46 = sld [smem:[#allocation2 + $0x9]]
    %s47 = sld [smem:[#allocation2 + $0xa]]
    %s48 = sld [smem:[#allocation2 + $0xb]]
    %s49 = sld [smem:[#allocation2 + $0xc]]
    %s50 = sld [smem:[#allocation2 + $0xd]]
    %s51 = sld [smem:[#allocation2 + $0xe]]
    %s52 = sld [smem:[#allocation2 + $0xf]]
    %s53 = sld [smem:[#allocation2 + $0x10]]
    %s54 = sld [smem:[#allocation2 + $0x11]]
    %s55 = sld [smem:[#allocation2 + $0x12]]
    %s56 = sld [smem:[#allocation2 + $0x13]]
    %s57 = sld [smem:[#allocation2 + $0x14]]
    %s58 = sld [smem:[#allocation2 + $0x15]]
    %s59 = sld [smem:[#allocation2 + $0x16]]
    %s60 = sld [smem:[#allocation2 + $0x17]]
    %s61 = sld [smem:[#allocation2 + $0x18]]
    %s62 = sld [smem:[#allocation2 + $0x19]]
    %s63 = sld [smem:[#allocation2 + $0x1a]]
    %s64 = sld [smem:[#allocation2 + $0x1b]]
    %s65 = sld [smem:[#allocation2 + $0x1c]]
    %s66 = sld [smem:[#allocation2 + $0x1d]]
    %s67 = sld [smem:[#allocation2 + $0x1e]]
    %s68 = sld [smem:[#allocation2 + $0x1f]]
    %s69 = sld [smem:[#allocation2 + $0x20]]
    %s70 = sld [smem:[#allocation2 + $0x21]]
    %s71 = sld [smem:[#allocation2 + $0x22]]
    %s72 = sld [smem:[#allocation2 + $0x23]]
    %s73 = sld [smem:[#allocation2 + $0x24]]
    %s74 = sld [smem:[#allocation2 + $0x25]]
    %s75 = sld [smem:[#allocation2 + $0x26]]
    %s76 = sld [smem:[#allocation2 + $0x27]]
    %s77 = sld [smem:[#allocation2 + $0x28]]
    %s78 = sld [smem:[#allocation2 + $0x29]]
    %s79 = sld [smem:[#allocation2 + $0x2a]]
    %s80 = sld [smem:[#allocation2 + $0x2b]]
    %s81 = sld [smem:[#allocation2 + $0x2c]]
    %s82 = sld [smem:[#allocation2 + $0x2d]]
    %s83 = sld [smem:[#allocation2 + $0x2e]]
    %s84 = sld [smem:[#allocation2 + $0x2f]]
    %s85 = sld [smem:[#allocation2 + $0x30]]
    %s86 = sld [smem:[#allocation2 + $0x31]]
    %s87 = sld [smem:[#allocation2 + $0x32]]
    %s88 = sld [smem:[#allocation2 + $0x33]]
    %s89 = sld [smem:[#allocation2 + $0x34]]
    %s90 = sld [smem:[#allocation2 + $0x35]]
    %s91 = sld [smem:[#allocation2 + $0x36]]
    %s92 = sld [smem:[#allocation2 + $0x37]]
    %s93 = sld [smem:[#allocation2 + $0x38]]
    %s94 = sld [smem:[#allocation2 + $0x39]]
    %s95 = sld [smem:[#allocation2 + $0x3a]]
    %s96 = sld [smem:[#allocation2 + $0x3b]]
    %s97 = sld [smem:[#allocation2 + $0x3c]]
    %s98 = sld [smem:[#allocation2 + $0x3d]]
    %s99 = sld [smem:[#allocation2 + $0x3e]]
    %s100 = sld [smem:[#allocation2 + $0x3f]]
    %s101 = sld [smem:[#allocation2 + $0x40]]
    %s102 = sld [smem:[#allocation2 + $0x41]]
    %s103 = sld [smem:[#allocation2 + $0x42]]
    %s104 = sld [smem:[#allocation2 + $0x43]]
    %s105 = sld [smem:[#allocation2 + $0x44]]
    %s106 = sld [smem:[#allocation2 + $0x45]]
    %s107 = sld [smem:[#allocation2 + $0x46]]
    %s108 = sld [smem:[#allocation2 + $0x47]]
    %s109 = sld [smem:[#allocation2 + $0x48]]
    %s110 = sld [smem:[#allocation2 + $0x49]]
    %s111 = sld [smem:[#allocation2 + $0x4a]]
    %s112 = sld [smem:[#allocation2 + $0x4b]]
    %s113 = sld [smem:[#allocation2 + $0x4c]]
    %s114 = sld [smem:[#allocation2 + $0x4d]]
    %s115 = sld [smem:[#allocation2 + $0x4e]]
    %s116 = sld [smem:[#allocation2 + $0x4f]]
    %s117 = sld [smem:[#allocation2 + $0x50]]
    %s118 = sld [smem:[#allocation2 + $0x51]]
    %s119 = sld [smem:[#allocation2 + $0x52]]
    %s120 = sld [smem:[#allocation2 + $0x53]]
    %s121 = sld [smem:[#allocation2 + $0x54]]
    %s122 = sld [smem:[#allocation2 + $0x55]]
    %s123 = sld [smem:[#allocation2 + $0x56]]
    %s124 = sld [smem:[#allocation2 + $0x57]]
    %s125 = sld [smem:[#allocation2 + $0x58]]
    %s126 = sld [smem:[#allocation2 + $0x59]]
    %s127 = sld [smem:[#allocation2 + $0x5a]]
    %v128 = vld [vmem:[#allocation6] sm:$0xff]
    %s129 = scalar_lea.vmem [#allocation6], 8
    %v130 = vld [vmem:[%s129] sm:$0xff]
    %v131 = vstv %s117
    %v132 = vadd.f32 %v131, 0.0
    %v133 = vstv %s118
    %v134 = vadd.f32 %v133, 0.0
    %v135 = vstv %s37
    %v136 = vmul.f32 %v128, %v135
    %v137 = vstv %s38
    %v138 = vmul.f32 %v130, %v137
    %v139 = vadd.f32 %v136, %v138
    %v140 = vstv %s69
    %v141 = vadd.f32 %v139, %v140
    %v142 = vmax.f32 %v141, 0.0
    %v143 = vstv %s85
    %v144 = vmul.f32 %v142, %v143
    %v145 = vadd.f32 %v132, %v144
    %v146 = vstv %s101
    %v147 = vmul.f32 %v142, %v146
    %v148 = vadd.f32 %v134, %v147
    %v149 = vstv %s39
    %v150 = vmul.f32 %v128, %v149
    %v151 = vstv %s40
    %v152 = vmul.f32 %v130, %v151
    %v153 = vadd.f32 %v150, %v152
    %v154 = vstv %s70
    %v155 = vadd.f32 %v153, %v154
    %v156 = vmax.f32 %v155, 0.0
    %v157 = vstv %s86
    %v158 = vmul.f32 %v156, %v157
    %v159 = vadd.f32 %v145, %v158
    %v160 = vstv %s102
    %v161 = vmul.f32 %v156, %v160
    %v162 = vadd.f32 %v148, %v161
    %v163 = vstv %s41
    %v164 = vmul.f32 %v128, %v163
    %v165 = vstv %s42
    %v166 = vmul.f32 %v130, %v165
    %v167 = vadd.f32 %v164, %v166
    %v168 = vstv %s71
    %v169 = vadd.f32 %v167, %v168
    %v170 = vmax.f32 %v169, 0.0
    %v171 = vstv %s87
    %v172 = vmul.f32 %v170, %v171
    %v173 = vadd.f32 %v159, %v172
    %v174 = vstv %s103
    %v175 = vmul.f32 %v170, %v174
    %v176 = vadd.f32 %v162, %v175
    %v177 = vstv %s43
    %v178 = vmul.f32 %v128, %v177
    %v179 = vstv %s44
    %v180 = vmul.f32 %v130, %v179
    %v181 = vadd.f32 %v178, %v180
    %v182 = vstv %s72
    %v183 = vadd.f32 %v181, %v182
    %v184 = vmax.f32 %v183, 0.0
    %v185 = vstv %s88
    %v186 = vmul.f32 %v184, %v185
    %v187 = vadd.f32 %v173, %v186
    %v188 = vstv %s104
    %v189 = vmul.f32 %v184, %v188
    %v190 = vadd.f32 %v176, %v189
    %v191 = vstv %s45
    %v192 = vmul.f32 %v128, %v191
    %v193 = vstv %s46
    %v194 = vmul.f32 %v130, %v193
    %v195 = vadd.f32 %v192, %v194
    %v196 = vstv %s73
    %v197 = vadd.f32 %v195, %v196
    %v198 = vmax.f32 %v197, 0.0
    %v199 = vstv %s89
    %v200 = vmul.f32 %v198, %v199
    %v201 = vadd.f32 %v187, %v200
    %v202 = vstv %s105
    %v203 = vmul.f32 %v198, %v202
    %v204 = vadd.f32 %v190, %v203
    %v205 = vstv %s47
    %v206 = vmul.f32 %v128, %v205
    %v207 = vstv %s48
    %v208 = vmul.f32 %v130, %v207
    %v209 = vadd.f32 %v206, %v208
    %v210 = vstv %s74
    %v211 = vadd.f32 %v209, %v210
    %v212 = vmax.f32 %v211, 0.0
    %v213 = vstv %s90
    %v214 = vmul.f32 %v212, %v213
    %v215 = vadd.f32 %v201, %v214
    %v216 = vstv %s106
    %v217 = vmul.f32 %v212, %v216
    %v218 = vadd.f32 %v204, %v217
    %v219 = vstv %s49
    %v220 = vmul.f32 %v128, %v219
    %v221 = vstv %s50
    %v222 = vmul.f32 %v130, %v221
    %v223 = vadd.f32 %v220, %v222
    %v224 = vstv %s75
    %v225 = vadd.f32 %v223, %v224
    %v226 = vmax.f32 %v225, 0.0
    %v227 = vstv %s91
    %v228 = vmul.f32 %v226, %v227
    %v229 = vadd.f32 %v215, %v228
    %v230 = vstv %s107
    %v231 = vmul.f32 %v226, %v230
    %v232 = vadd.f32 %v218, %v231
    %v233 = vstv %s51
    %v234 = vmul.f32 %v128, %v233
    %v235 = vstv %s52
    %v236 = vmul.f32 %v130, %v235
    %v237 = vadd.f32 %v234, %v236
    %v238 = vstv %s76
    %v239 = vadd.f32 %v237, %v238
    %v240 = vmax.f32 %v239, 0.0
    %v241 = vstv %s92
    %v242 = vmul.f32 %v240, %v241
    %v243 = vadd.f32 %v229, %v242
    %v244 = vstv %s108
    %v245 = vmul.f32 %v240, %v244
    %v246 = vadd.f32 %v232, %v245
    %v247 = vstv %s53
    %v248 = vmul.f32 %v128, %v247
    %v249 = vstv %s54
    %v250 = vmul.f32 %v130, %v249
    %v251 = vadd.f32 %v248, %v250
    %v252 = vstv %s77
    %v253 = vadd.f32 %v251, %v252
    %v254 = vmax.f32 %v253, 0.0
    %v255 = vstv %s93
    %v256 = vmul.f32 %v254, %v255
    %v257 = vadd.f32 %v243, %v256
    %v258 = vstv %s109
    %v259 = vmul.f32 %v254, %v258
    %v260 = vadd.f32 %v246, %v259
    %v261 = vstv %s55
    %v262 = vmul.f32 %v128, %v261
    %v263 = vstv %s56
    %v264 = vmul.f32 %v130, %v263
    %v265 = vadd.f32 %v262, %v264
    %v266 = vstv %s78
    %v267 = vadd.f32 %v265, %v266
    %v268 = vmax.f32 %v267, 0.0
    %v269 = vstv %s94
    %v270 = vmul.f32 %v268, %v269
    %v271 = vadd.f32 %v257, %v270
    %v272 = vstv %s110
    %v273 = vmul.f32 %v268, %v272
    %v274 = vadd.f32 %v260, %v273
    %v275 = vstv %s57
    %v276 = vmul.f32 %v128, %v275
    %v277 = vstv %s58
    %v278 = vmul.f32 %v130, %v277
    %v279 = vadd.f32 %v276, %v278
    %v280 = vstv %s79
    %v281 = vadd.f32 %v279, %v280
    %v282 = vmax.f32 %v281, 0.0
    %v283 = vstv %s95
    %v284 = vmul.f32 %v282, %v283
    %v285 = vadd.f32 %v271, %v284
    %v286 = vstv %s111
    %v287 = vmul.f32 %v282, %v286
    %v288 = vadd.f32 %v274, %v287
    %v289 = vstv %s59
    %v290 = vmul.f32 %v128, %v289
    %v291 = vstv %s60
    %v292 = vmul.f32 %v130, %v291
    %v293 = vadd.f32 %v290, %v292
    %v294 = vstv %s80
    %v295 = vadd.f32 %v293, %v294
    %v296 = vmax.f32 %v295, 0.0
    %v297 = vstv %s96
    %v298 = vmul.f32 %v296, %v297
    %v299 = vadd.f32 %v285, %v298
    %v300 = vstv %s112
    %v301 = vmul.f32 %v296, %v300
    %v302 = vadd.f32 %v288, %v301
    %v303 = vstv %s61
    %v304 = vmul.f32 %v128, %v303
    %v305 = vstv %s62
    %v306 = vmul.f32 %v130, %v305
    %v307 = vadd.f32 %v304, %v306
    %v308 = vstv %s81
    %v309 = vadd.f32 %v307, %v308
    %v310 = vmax.f32 %v309, 0.0
    %v311 = vstv %s97
    %v312 = vmul.f32 %v310, %v311
    %v313 = vadd.f32 %v299, %v312
    %v314 = vstv %s113
    %v315 = vmul.f32 %v310, %v314
    %v316 = vadd.f32 %v302, %v315
    %v317 = vstv %s63
    %v318 = vmul.f32 %v128, %v317
    %v319 = vstv %s64
    %v320 = vmul.f32 %v130, %v319
    %v321 = vadd.f32 %v318, %v320
    %v322 = vstv %s82
    %v323 = vadd.f32 %v321, %v322
    %v324 = vmax.f32 %v323, 0.0
    %v325 = vstv %s98
    %v326 = vmul.f32 %v324, %v325
    %v327 = vadd.f32 %v313, %v326
    %v328 = vstv %s114
    %v329 = vmul.f32 %v324, %v328
    %v330 = vadd.f32 %v316, %v329
    %v331 = vstv %s65
    %v332 = vmul.f32 %v128, %v331
    %v333 = vstv %s66
    %v334 = vmul.f32 %v130, %v333
    %v335 = vadd.f32 %v332, %v334
    %v336 = vstv %s83
    %v337 = vadd.f32 %v335, %v336
    %v338 = vmax.f32 %v337, 0.0
    %v339 = vstv %s99
    %v340 = vmul.f32 %v338, %v339
    %v341 = vadd.f32 %v327, %v340
    %v342 = vstv %s115
    %v343 = vmul.f32 %v338, %v342
    %v344 = vadd.f32 %v330, %v343
    %v345 = vstv %s67
    %v346 = vmul.f32 %v128, %v345
    %v347 = vstv %s68
    %v348 = vmul.f32 %v130, %v347
    %v349 = vadd.f32 %v346, %v348
    %v350 = vstv %s84
    %v351 = vadd.f32 %v349, %v350
    %v352 = vmax.f32 %v351, 0.0
    %v353 = vstv %s100
    %v354 = vmul.f32 %v352, %v353
    %v355 = vadd.f32 %v341, %v354
    %v356 = vstv %s116
    %v357 = vmul.f32 %v352, %v356
    %v358 = vadd.f32 %v344, %v357
    %v359 = vmax.f32 %v355, 0.0
    %v360 = vmax.f32 %v358, 0.0
    %v361 = vstv %s119
    %v362 = vmul.f32 %v359, %v361
    %v363 = vstv %s120
    %v364 = vmul.f32 %v360, %v363
    %v365 = vadd.f32 %v362, %v364
    %v366 = vstv %s125
    %v367 = vadd.f32 %v365, %v366
    %368 = vst [vmem:[#allocation7] sm:$0xff] %v367
    %v369 = vstv %s121
    %v370 = vmul.f32 %v359, %v369
    %v371 = vstv %s122
    %v372 = vmul.f32 %v360, %v371
    %v373 = vadd.f32 %v370, %v372
    %v374 = vstv %s126
    %v375 = vadd.f32 %v373, %v374
    %s376 = scalar_lea.vmem [#allocation7], 8
    %377 = vst [vmem:[%s376] sm:$0xff] %v375
    %v378 = vstv %s123
    %v379 = vmul.f32 %v359, %v378
    %v380 = vstv %s124
    %v381 = vmul.f32 %v360, %v380
    %v382 = vadd.f32 %v379, %v381
    %v383 = vstv %s127
    %v384 = vadd.f32 %v382, %v383
    %s385 = scalar_lea.vmem [#allocation7], 16
    %386 = vst [vmem:[%s385] sm:$0xff] %v384
    // Predicated region
    $region18: #{tpu_custom_call.1} parent=1 // pred_check
      _
    $region19: #{tpu_custom_call.1} parent=1 // pred_check_branch
      %388 = sbr.rel (0) target = $region21
    $region20: #{tpu_custom_call.1} parent=1 // pred_region
      %s390 = ssub.s32 384, 384
      %391 = vsyncadd [#allocation4], %s390
      %s392 = sshll.u32 [#allocation7], 4
      %s393 = int_to_ptr.vmem [resolvable:$true] %s392
      %398 = dma.vmem_to_hbm [thread:$0]  %s393, 384, %s2, [#allocation4], 128, 128, 8
    $region21: #{tpu_custom_call.1} parent=1 // pred_fallthru
      _
    // Predicated region
    $region22: #{tpu_custom_call.1} parent=1 // pred_check
      _
    $region23: #{tpu_custom_call.1} parent=1 // pred_check_branch
      %400 = sbr.rel (0) target = $region25
    $region24: #{tpu_custom_call.1} parent=1 // pred_region
      %401 = dma.done [#allocation4], 384
    $region25: #{tpu_custom_call.1} parent=1 // pred_fallthru
      _
    %402 = vsyncpa [#allocation3], 1
    %403 = vsyncpa [#allocation4], 1
    %404 = vsyncpa [#allocation5], 1

</llo_original>
